<compile_context>
chip_gen: v7x
topology: tpu7x:2x2x1
jax: 0.10.0
libtpu: 0.0.40
codegen_flags: <defaults>
</compile_context>

<pallas_src>
from functools import partial

import jax
import jax.numpy as jnp
from jax.experimental import pallas as pl
from jax.experimental.pallas import tpu as pltpu


def _fused_transform_kernel(x_ref, o_ref):
    """Fused elementwise transforms on a (3, rows_tile, 128) block.

    Row 0: distance -> log, row 1: phi -> sin, row 2: dec -> cos.
    """
    o_ref[0] = jnp.log(x_ref[0])
    o_ref[1] = jnp.sin(x_ref[1])
    o_ref[2] = jnp.cos(x_ref[2])


@partial(jax.jit, static_argnames=("rows_per_tile",))
def _apply_transforms_pallas(distance, phi, dec, *, rows_per_tile=512):
    """Run the fused transform kernel on three (batch,) f32 parameter vectors."""
    batch = distance.shape[0]
    lanes = 128

    # Lane-dense packing: (3, batch) -> (3, rows_padded, 128), rows padded to
    # a multiple of the tile's sublane count (itself a multiple of 8).
    rows = pl.cdiv(batch, lanes)
    rows_tile = max(8, min(int(rows_per_tile), ((rows + 7) // 8) * 8))
    rows_tile = ((rows_tile + 7) // 8) * 8
    rows_padded = ((rows + rows_tile - 1) // rows_tile) * rows_tile
    total = rows_padded * lanes
    pad = total - batch

    stacked = jnp.stack([distance, phi, dec], axis=0)
    # Pad with 1.0 so log() of padded lanes stays finite (padded lanes are
    # sliced off afterwards and never written back into live buffers).
    stacked = jnp.pad(stacked, ((0, 0), (0, pad)), constant_values=1.0)
    slab = stacked.reshape(3, rows_padded, lanes)

    grid = (rows_padded // rows_tile,)
    spec = pl.BlockSpec((3, rows_tile, lanes), lambda i: (0, i, 0))

    out = pl.pallas_call(
        _fused_transform_kernel,
        grid=grid,
        in_specs=[spec],
        out_specs=spec,
        out_shape=jax.ShapeDtypeStruct((3, rows_padded, lanes), jnp.float32),
        input_output_aliases={0: 0},
        compiler_params=pltpu.CompilerParams(
            dimension_semantics=("parallel",),
            vmem_limit_bytes=32 * 1024 * 1024,
        ),
    )(slab)

    flat = out.reshape(3, total)
    return flat[0, :batch], flat[1, :batch], flat[2, :batch]


class ParameterTransformer:
    """JAX/Pallas equivalent of amplfi's ParameterTransformer.

    Specialized to transforms = {"distance": log, "phi": sin, "dec": cos};
    all three transforms are fused into one Pallas kernel call for large
    batches, with a plain-jnp fast path for tiny batches where pallas_call
    dispatch overhead dominates.
    """

    def __init__(self, min_pallas_batch: int = 16384, rows_per_tile: int = 512):
        self.transform_keys = ("distance", "phi", "dec")
        self.min_pallas_batch = min_pallas_batch
        self.rows_per_tile = rows_per_tile

    def __call__(self, parameters: dict) -> dict:
        d = parameters["distance"]
        p = parameters["phi"]
        c = parameters["dec"]

        if d.shape[0] < self.min_pallas_batch:
            # Tiny batch: let XLA fuse three elementwise transcendentals.
            transformed = {
                "distance": jnp.log(d),
                "phi": jnp.sin(p),
                "dec": jnp.cos(c),
            }
        else:
            log_d, sin_p, cos_d = _apply_transforms_pallas(
                d, p, c, rows_per_tile=self.rows_per_tile
            )
            transformed = {"distance": log_d, "phi": sin_p, "dec": cos_d}

        # Matches `parameters.update(transformed); return parameters`
        parameters = dict(parameters)
        parameters.update(transformed)
        return parameters


def _reference(parameters: dict) -> dict:
    ref = dict(parameters)
    ref.update({
        "distance": jnp.log(parameters["distance"]),
        "phi": jnp.sin(parameters["phi"]),
        "dec": jnp.cos(parameters["dec"]),
    })
    return ref


def _make_params(key, batch):
    k1, k2, k3, k4, k5 = jax.random.split(key, 5)
    return {
        # keys that get transformed
        "distance": jax.random.uniform(k1, (batch,), jnp.float32,
                                       minval=100.0, maxval=1000.0),
        "phi": jax.random.uniform(k2, (batch,), jnp.float32,
                                  minval=0.0, maxval=2.0 * jnp.pi),
        "dec": jax.random.uniform(k3, (batch,), jnp.float32,
                                  minval=-jnp.pi / 2, maxval=jnp.pi / 2),
        # keys that pass through untouched
        "chirp_mass": jax.random.uniform(k4, (batch,), jnp.float32,
                                         minval=5.0, maxval=50.0),
        "mass_ratio": jax.random.uniform(k5, (batch,), jnp.float32,
                                         minval=0.1, maxval=1.0),
    }


if __name__ == "__main__":
    key = jax.random.PRNGKey(0)
    key_a, key_b = jax.random.split(key)

    # --- Pallas path: batch chosen to be a non-multiple of 128 so the
    # padding / multi-step grid path is exercised (rows_per_tile=8 keeps the
    # grid > 1 even at this small demo size).
    batch = 2053
    params = _make_params(key_a, batch)
    module = ParameterTransformer(min_pallas_batch=0, rows_per_tile=8)
    out = module(params)
    jax.block_until_ready(out)

    ref = _reference(params)
    for k in ref:
        assert out[k].shape == ref[k].shape and out[k].dtype == ref[k].dtype, k
        assert jnp.allclose(out[k], ref[k], rtol=1e-5, atol=1e-6), k

    # --- Small-batch fallback path (plain jnp, no Pallas dispatch overhead).
    small = _make_params(key_b, 8)
    out_small = ParameterTransformer()(small)
    jax.block_until_ready(out_small)
    ref_small = _reference(small)
    for k in ref_small:
        assert jnp.allclose(out_small[k], ref_small[k], rtol=1e-5, atol=1e-6), k

    print("KERNEL_OK")
</pallas_src>

<mosaic_0001>
module attributes {stable_mosaic.version = 11 : i64} {
  func.func @_fused_transform_kernel(%arg0: i32, %arg1: memref<3x8x128xf32, #tpu.memory_space<vmem>>, %arg2: memref<3x8x128xf32, #tpu.memory_space<vmem>>) attributes {dimension_semantics = [#tpu.dimension_semantics<parallel>], iteration_bounds = array<i64: 3>, scalar_prefetch = 0 : i64, scratch_operands = 0 : i64, tpu.core_type = #tpu.core_type<tc>, window_params = [{transform_indices = @transform_0, window_bounds = array<i64: 3, 8, 128>}, {transform_indices = @transform_1, window_bounds = array<i64: 3, 8, 128>}]} {
    %c0 = arith.constant 0 : index
    %c0_0 = arith.constant 0 : index
    %c0_1 = arith.constant 0 : index
    %0 = vector.load %arg1[%c0, %c0_0, %c0_1] : memref<3x8x128xf32, #tpu.memory_space<vmem>>, vector<1x8x128xf32>
    %1 = vector.shape_cast %0 : vector<1x8x128xf32> to vector<8x128xf32>
    %2 = math.log %1 : vector<8x128xf32>
    %c0_2 = arith.constant 0 : index
    %c0_3 = arith.constant 0 : index
    %c0_4 = arith.constant 0 : index
    %3 = vector.load %arg2[%c0_2, %c0_3, %c0_4] : memref<3x8x128xf32, #tpu.memory_space<vmem>>, vector<1x8x128xf32>
    %4 = vector.shape_cast %3 : vector<1x8x128xf32> to vector<8x128xf32>
    %5 = vector.shape_cast %2 : vector<8x128xf32> to vector<1x8x128xf32>
    tpu.vector_store %arg2[%c0_2, %c0_3, %c0_4], %5 {strides = array<i32>} : memref<3x8x128xf32, #tpu.memory_space<vmem>>, vector<1x8x128xf32>,
    %c1 = arith.constant 1 : index
    %c0_5 = arith.constant 0 : index
    %c0_6 = arith.constant 0 : index
    %6 = vector.load %arg1[%c1, %c0_5, %c0_6] : memref<3x8x128xf32, #tpu.memory_space<vmem>>, vector<1x8x128xf32>
    %7 = vector.shape_cast %6 : vector<1x8x128xf32> to vector<8x128xf32>
    %8 = math.sin %7 : vector<8x128xf32>
    %c1_7 = arith.constant 1 : index
    %c0_8 = arith.constant 0 : index
    %c0_9 = arith.constant 0 : index
    %9 = vector.load %arg2[%c1_7, %c0_8, %c0_9] : memref<3x8x128xf32, #tpu.memory_space<vmem>>, vector<1x8x128xf32>
    %10 = vector.shape_cast %9 : vector<1x8x128xf32> to vector<8x128xf32>
    %11 = vector.shape_cast %8 : vector<8x128xf32> to vector<1x8x128xf32>
    tpu.vector_store %arg2[%c1_7, %c0_8, %c0_9], %11 {strides = array<i32>} : memref<3x8x128xf32, #tpu.memory_space<vmem>>, vector<1x8x128xf32>,
    %c2 = arith.constant 2 : index
    %c0_10 = arith.constant 0 : index
    %c0_11 = arith.constant 0 : index
    %12 = vector.load %arg1[%c2, %c0_10, %c0_11] : memref<3x8x128xf32, #tpu.memory_space<vmem>>, vector<1x8x128xf32>
    %13 = vector.shape_cast %12 : vector<1x8x128xf32> to vector<8x128xf32>
    %14 = math.cos %13 : vector<8x128xf32>
    %c2_12 = arith.constant 2 : index
    %c0_13 = arith.constant 0 : index
    %c0_14 = arith.constant 0 : index
    %15 = vector.load %arg2[%c2_12, %c0_13, %c0_14] : memref<3x8x128xf32, #tpu.memory_space<vmem>>, vector<1x8x128xf32>
    %16 = vector.shape_cast %15 : vector<1x8x128xf32> to vector<8x128xf32>
    %17 = vector.shape_cast %14 : vector<8x128xf32> to vector<1x8x128xf32>
    tpu.vector_store %arg2[%c2_12, %c0_13, %c0_14], %17 {strides = array<i32>} : memref<3x8x128xf32, #tpu.memory_space<vmem>>, vector<1x8x128xf32>,
    return
  }
  func.func @transform_0(%arg0: i32) -> (i32, i32, i32) {
    %c0_i32 = arith.constant 0 : i32
    %c0_i32_0 = arith.constant 0 : i32
    %c0_i32_1 = arith.constant 0 : i32
    return %c0_i32, %arg0, %c0_i32_0 : i32, i32, i32
  }
  func.func @transform_1(%arg0: i32) -> (i32, i32, i32) {
    %c0_i32 = arith.constant 0 : i32
    %c0_i32_0 = arith.constant 0 : i32
    %c0_i32_1 = arith.constant 0 : i32
    return %c0_i32, %arg0, %c0_i32_0 : i32, i32, i32
  }
}

</mosaic_0001>

<llo_original>
// kernel: _apply_transforms_pallas.1
$region0: #{_apply_transforms_pallas.1}
  #allocation0 [shape = 'u32[]', space=smem, size = 0x4, offset = 0x4, fixed_abs, tag = 'smem constant byte address 0x4 - core index']
  #allocation1 [shape = 'u32[144,128]{1,0:T(1,128)}', space=vmem, size = 0x12000, scoped, tag = 'internal scratch']
  %s0 = inlined_call_operand.vmem [shape: f32[3,24,128], index: 0, kind: input, shape index: {}, may-alias: {0,1}]
  %s1 = inlined_call_operand.vmem [shape: f32[3,24,128], index: 1, kind: output, shape index: {}, may-alias: {0,1}]
  %s2 = sld [smem:[#allocation0]]
  $region109: #{_apply_transforms_pallas.1} parent=0
    _
  %s4 = ssub.s32 1, %s2
  %s5 = scalar_select 0, %s4, %s2
  $region1: #{_apply_transforms_pallas.1} parent=0
    #allocation2 [shape = 'u8[24576]{0}', space=vmem, size = 0x6000, scoped, tag = 'input window, operand 0']
    #allocation3 [shape = 'u8[24576]{0}', space=vmem, size = 0x6000, scoped, tag = 'output window, operand 0']
    loop: start=0, step=1, limit=5
    $region2: #{_apply_transforms_pallas.1} parent=1 // loop_pre_header
      _
    $region3: #{_apply_transforms_pallas.1} parent=1 // loop_header
      %s7 = sphi 0, %s11
      %p8 = scmp.ge.s32.totalorder %s7, 5
      %s17 = sphi 0, %s19
      %s20 = sphi 0, %s17
      %s21 = sphi 0, %s20
      %s37 = sphi 0, %s21
      %s43 = sphi 0, %s45
      %s46 = sphi 0, %s43
      %s47 = sphi 0, %s46
      %s63 = sphi 0, %s47
    $region4: #{_apply_transforms_pallas.1} parent=1 // loop_header_branch
      %10 = sbr.rel (%p8) target = $region8
    $region5: #{_apply_transforms_pallas.1} parent=1 // loop_body
      %s12 = ssub.s32 %s7, 1
      %s13 = ssub.s32 %s7, 2
      %s14 = sadd.s32 %s7, 1
      %s15 = ssub.s32 %s7, %s14
      %p16 = scmp.eq.s32.totalorder %s15, 0
      %s18 = sadd.s32 %s17, 1
      %s19 = scalar_select %p16, %s17, %s18
      %p22 = pneg %p16
      %p23 = scmp.eq.s32.totalorder %s7, 2
      %p24 = por %p22, %p23
      %p25 = scmp.ne.s32.totalorder %s17, %s20
      %p26 = scmp.eq.s32.totalorder %s7, 0
      %p27 = por %p25, %p26
      %p28 = scmp.ne.s32.totalorder %s17, %s20
      %p29 = scmp.eq.s32.totalorder %s12, 2
      %p30 = por %p28, %p29
      %p31 = scmp.ne.s32.totalorder %s20, %s21
      %p32 = scmp.eq.s32.totalorder %s12, 0
      %p33 = por %p31, %p32
      %p34 = scmp.ne.s32.totalorder %s20, %s21
      %p35 = scmp.eq.s32.totalorder %s13, 2
      %p36 = por %p34, %p35
      %p38 = scmp.ne.s32.totalorder %s21, %s37
      %p39 = scmp.eq.s32.totalorder %s13, 0
      %p40 = por %p38, %p39
      %s41 = ssub.s32 %s7, %s14
      %p42 = scmp.eq.s32.totalorder %s41, 0
      %s44 = sadd.s32 %s43, 1
      %s45 = scalar_select %p42, %s43, %s44
      %p48 = pneg %p42
      %p49 = scmp.eq.s32.totalorder %s7, 2
      %p50 = por %p48, %p49
      %p51 = scmp.ne.s32.totalorder %s43, %s46
      %p52 = scmp.eq.s32.totalorder %s7, 0
      %p53 = por %p51, %p52
      %p54 = scmp.ne.s32.totalorder %s43, %s46
      %p55 = scmp.eq.s32.totalorder %s12, 2
      %p56 = por %p54, %p55
      %p57 = scmp.ne.s32.totalorder %s46, %s47
      %p58 = scmp.eq.s32.totalorder %s12, 0
      %p59 = por %p57, %p58
      %p60 = scmp.ne.s32.totalorder %s46, %s47
      %p61 = scmp.eq.s32.totalorder %s13, 2
      %p62 = por %p60, %p61
      %p64 = scmp.ne.s32.totalorder %s47, %s63
      %p65 = scmp.eq.s32.totalorder %s13, 0
      %p66 = por %p64, %p65
      %p67 = scmp.le.s32.totalorder 1, %s7
      %p68 = scmp.lt.s32.totalorder %s7, 4
      %p69 = pnand %p67, %p68
      %p70 = pneg %p69
      // Predicated region
      $region9: #{_apply_transforms_pallas.1} parent=5 // pred_check
        _
      $region10: #{_apply_transforms_pallas.1} parent=5 // pred_check_branch
        %72 = sbr.rel (%p69) target = $region12
      $region11: #{_apply_transforms_pallas.1} parent=5 // pred_region
        %s73 = ssub.s32 %s7, 1
      $region12: #{_apply_transforms_pallas.1} parent=5 // pred_fallthru
        _
      %p74 = scmp.lt.s32.totalorder %s7, 3
      // Predicated region
      $region13: #{_apply_transforms_pallas.1} parent=5 // pred_check
        %p75 = pneg %p74
      $region14: #{_apply_transforms_pallas.1} parent=5 // pred_check_branch
        %77 = sbr.rel (%p75) target = $region16
      $region15: #{_apply_transforms_pallas.1} parent=5 // pred_region
        // Predicated region
        $region17: #{_apply_transforms_pallas.1} parent=15 // pred_check
          %p78 = pneg %p27
        $region18: #{_apply_transforms_pallas.1} parent=15 // pred_check_branch
          %80 = sbr.rel (%p78) target = $region20
        $region19: #{_apply_transforms_pallas.1} parent=15 // pred_region
          %s81 = sand.u32 %s17, 1
          %s82 = sand.u32 %s17, 1
          %s83 = smul.addr %s82, 24
          %s84 = scalar_lea.vmem [#allocation2], %s83
          %s85 = smul.addr %s7, 8
          %s86 = scalar_lea.vmem %s0, %s85
          // Predicated region
          $region21: #{_apply_transforms_pallas.1} parent=19 // pred_check
            _
          $region22: #{_apply_transforms_pallas.1} parent=19 // pred_check_branch
            %88 = sbr.rel (0) target = $region24
          $region23: #{_apply_transforms_pallas.1} parent=19 // pred_region
            // Predicated region
            $region25: #{_apply_transforms_pallas.1} parent=23 // pred_check
              _
            $region26: #{_apply_transforms_pallas.1} parent=23 // pred_check_branch
              %90 = sbr.rel (0) target = $region28
            $region27: #{_apply_transforms_pallas.1} parent=23 // pred_region
              // Predicated region
              $region40: #{_apply_transforms_pallas.1} parent=27 // pred_check
                _
              $region41: #{_apply_transforms_pallas.1} parent=27 // pred_check_branch
                %109 = sbr.rel (0) target = $region43
              $region42: #{_apply_transforms_pallas.1} parent=27 // pred_region
                loop: start=0, step=1, limit=1
                $region44: #{_apply_transforms_pallas.1} parent=42 // loop_pre_header
                  _
                $region45: #{_apply_transforms_pallas.1} parent=42 // loop_header
                  %s111 = sphi 0, %s115
                  %p112 = scmp.ge.s32.totalorder %s111, 1
                  %s116 = sphi %s86, %s86
                  %s117 = sphi %s84, %s84
                $region46: #{_apply_transforms_pallas.1} parent=42 // loop_header_branch
                  %114 = sbr.rel (%p112) target = $region50
                $region47: #{_apply_transforms_pallas.1} parent=42 // loop_body
                  %v118 = vld [vmem:[%s116] sm:$0xff]
                  %119 = vst [vmem:[%s117] sm:$0xff] %v118
                  %v120 = vld [vmem:[%s116 + $0x18] sm:$0xff]
                  %121 = vst [vmem:[%s117 + $0x8] sm:$0xff] %v120
                  %v122 = vld [vmem:[%s116 + $0x30] sm:$0xff]
                  %123 = vst [vmem:[%s117 + $0x10] sm:$0xff] %v122
                $region48: #{_apply_transforms_pallas.1} parent=42 // loop_footer
                  %s115 = sadd.s32 1, %s111
                $region49: #{_apply_transforms_pallas.1} parent=42 // loop_footer_branch
                  %110 = sbr.rel target = $region45
                $region50: #{_apply_transforms_pallas.1} parent=42 // loop_exit
                  _
              $region43: #{_apply_transforms_pallas.1} parent=27 // pred_fallthru
                _
              // Predicated region
              $region51: #{_apply_transforms_pallas.1} parent=27 // pred_check
                _
              $region52: #{_apply_transforms_pallas.1} parent=27 // pred_check_branch
                %125 = sbr.rel target = $region54
              $region53: #{_apply_transforms_pallas.1} parent=27 // pred_region
                _
              $region54: #{_apply_transforms_pallas.1} parent=27 // pred_fallthru
                _
            $region28: #{_apply_transforms_pallas.1} parent=23 // pred_fallthru
              _
            // Predicated region
            $region29: #{_apply_transforms_pallas.1} parent=23 // pred_check
              _
            $region30: #{_apply_transforms_pallas.1} parent=23 // pred_check_branch
              %92 = sbr.rel target = $region32
            $region31: #{_apply_transforms_pallas.1} parent=23 // pred_region
              loop: start=0, step=1, limit=1
              $region33: #{_apply_transforms_pallas.1} parent=31 // loop_pre_header
                _
              $region34: #{_apply_transforms_pallas.1} parent=31 // loop_header
                %s95 = sphi 0, %s99
                %p96 = scmp.ge.s32.totalorder %s95, 1
                %s100 = sphi %s86, %s86
                %s101 = sphi %s84, %s84
              $region35: #{_apply_transforms_pallas.1} parent=31 // loop_header_branch
                %98 = sbr.rel (%p96) target = $region39
              $region36: #{_apply_transforms_pallas.1} parent=31 // loop_body
                %v102 = vld [vmem:[%s100] sm:$0xff]
                %103 = vst [vmem:[%s101] sm:$0xff] %v102
                %v104 = vld [vmem:[%s100 + $0x18] sm:$0xff]
                %105 = vst [vmem:[%s101 + $0x8] sm:$0xff] %v104
                %v106 = vld [vmem:[%s100 + $0x30] sm:$0xff]
                %107 = vst [vmem:[%s101 + $0x10] sm:$0xff] %v106
              $region37: #{_apply_transforms_pallas.1} parent=31 // loop_footer
                %s99 = sadd.s32 1, %s95
              $region38: #{_apply_transforms_pallas.1} parent=31 // loop_footer_branch
                %94 = sbr.rel target = $region34
              $region39: #{_apply_transforms_pallas.1} parent=31 // loop_exit
                _
            $region32: #{_apply_transforms_pallas.1} parent=23 // pred_fallthru
              _
          $region24: #{_apply_transforms_pallas.1} parent=19 // pred_fallthru
            _
          %126 = vnop
        $region20: #{_apply_transforms_pallas.1} parent=15 // pred_fallthru
          _
      $region16: #{_apply_transforms_pallas.1} parent=5 // pred_fallthru
        _
      %p127 = scmp.le.s32.totalorder 1, %s7
      %p128 = scmp.lt.s32.totalorder %s7, 4
      %p129 = pnand %p127, %p128
      %p130 = pneg %p129
      // Predicated region
      $region55: #{_apply_transforms_pallas.1} parent=5 // pred_check
        _
      $region56: #{_apply_transforms_pallas.1} parent=5 // pred_check_branch
        %132 = sbr.rel (%p129) target = $region58
      $region57: #{_apply_transforms_pallas.1} parent=5 // pred_region
        %s133 = ssub.s32 %s7, 1
        %s134 = sand.u32 %s20, 1
        %s135 = sand.u32 %s20, 1
        %s136 = smul.addr %s135, 24
        %s137 = scalar_lea.vmem [#allocation2], %s136
        // Predicated region
        $region59: #{_apply_transforms_pallas.1} parent=57 // pred_check
          %p138 = pneg %p33
        $region60: #{_apply_transforms_pallas.1} parent=57 // pred_check_branch
          %140 = sbr.rel (%p138) target = $region62
        $region61: #{_apply_transforms_pallas.1} parent=57 // pred_region
          _
        $region62: #{_apply_transforms_pallas.1} parent=57 // pred_fallthru
          _
        %s141 = sand.u32 %s20, 1
        %s142 = sand.u32 %s20, 1
        %s143 = smul.addr %s142, 24
        %s144 = scalar_lea.vmem [#allocation2], %s143
        %p145 = pneg %p33
        %p146 = pneg %p30
        %p147 = pneg %p59
        %p148 = pneg %p56
        %s149 = sand.u32 %s46, 1
        %s150 = sand.u32 %s46, 1
        %s151 = smul.addr %s150, 24
        %s152 = scalar_lea.vmem [#allocation3], %s151
        %v153 = vld [vmem:[%s137] sm:$0xff]
        %v154 = vlog2.pop %v153
        %v155 = vmul.f32 %v154, 0.6931472
        %156 = vst [vmem:[%s152] sm:$0xff] %v155
        %s157 = scalar_lea.vmem %s137, 8 [#allocation2]
        %v158 = vld [vmem:[%s157] sm:$0xff]
        %v159 = vand.u32 2147483647, %v158
        %vm160 = vcmp.le.f32.partialorder %v159, 0.7853982
        %vm161 = vcmp.lt.s32.totalorder %v158, 0
        %v162 = vand.u32 %v158, 2139095040
        %v163 = vshrl.u32 %v162, 23
        %v164 = vsub.s32 %v163, 127
        %v165 = vand.u32 2147483647, %v158
        %v166 = vand.u32 %v165, 8388607
        %v167 = vor.u32 %v166, 8388608
        %v168 = vsub.s32 0, %v167
        %v169 = vadd.s32 %v164, 1
        %vm170 = vcmp.gt.s32.totalorder %v169, 0
        %v171 = vsel %vm170, %v169, 0
        %v172 = vshrl.u32 %v171, 5
        %v173 = vand.u32 %v171, 31
        %v174 = vsub.s32 32, %v173
        %v175 = vshrl.u32 683565275, %v174
        %v176 = vshll.u32 683565275, %v173
        %v177 = vshrl.u32 2475754826, %v174
        %v178 = vor.u32 %v176, %v177
        %v179 = vshll.u32 2475754826, %v173
        %v180 = vshrl.u32 2131351028, %v174
        %v181 = vor.u32 %v179, %v180
        %v182 = vshll.u32 2131351028, %v173
        %v183 = vshrl.u32 2102212464, %v174
        %v184 = vor.u32 %v182, %v183
        %v185 = vshll.u32 2102212464, %v173
        %v186 = vshrl.u32 920167782, %v174
        %v187 = vor.u32 %v185, %v186
        %v188 = vshll.u32 920167782, %v173
        %v189 = vshrl.u32 1326507024, %v174
        %v190 = vor.u32 %v188, %v189
        %vm191 = vcmp.lt.s32.totalorder %v172, 1
        %vm192 = vcmp.lt.s32.totalorder %v172, 2
        %vm193 = vcmp.lt.s32.totalorder %v172, 3
        %vm194 = vcmp.lt.s32.totalorder %v172, 4
        %v195 = vsel %vm191, %v175, %v178
        %v196 = vsel %vm194, %v184, 2102212464
        %v197 = vsel %vm193, %v181, %v196
        %v198 = vsel %vm192, %v195, %v197
        %v199 = vsel %vm191, %v178, %v181
        %v200 = vsel %vm194, %v187, 920167782
        %v201 = vsel %vm193, %v184, %v200
        %v202 = vsel %vm192, %v199, %v201
        %v203 = vsel %vm191, %v181, %v184
        %v204 = vsel %vm194, %v190, 1326507024
        %v205 = vsel %vm193, %v187, %v204
        %v206 = vsel %vm192, %v203, %v205
        %v207 = vshll.u32 %v167, 8
        %v208 = vmul.u32.u64.compose %v207, %v206
        %v209 = vextract.low.u32 %v208
        %v210 = vextract.high.u32 %v208
        %v211 = vmul.u32.u64.compose %v207, %v202
        %v212 = vextract.low.u32 %v211
        %v213 = vextract.high.u32 %v211
        %v214 = vmul.u32 %v207, %v198
        %v215 = vadd.s32 %v210, %v212
        %vm216 = vc.u32 %v210, %v212
        %v217 = vadd.s32 %v213, 1
        %v218 = vsel %vm216, %v217, %v213
        %v219 = vadd.s32 %v214, %v218
        %v220 = vadd.s32 %v219, 536870912
        %v221 = vshrl.u32 %v220, 30
        %v222 = vshll.u32 %v221, 30
        %v223 = vsub.s32 %v219, %v222
        %vm224 = vcmp.lt.s32.totalorder %v223, 0
        %v225 = vsub.s32 0, %v223
        %v226 = vsel %vm224, %v225, %v223
        %v227 = vclz %v226
        %v228 = vsub.s32 %v227, 2
        %vm229 = vcmp.gt.s32.totalorder 0, %v228
        %v230 = vsel %vm229, 0, %v228
        %v231 = vsub.s32 32, %v230
        %v232 = vshll.u32 %v223, %v230
        %v233 = vshrl.u32 %v215, %v231
        %v234 = vor.u32 %v232, %v233
        %v235 = vsub.s32 4294967266, %v230
        %v236 = vadd.s32 %v235, 127
        %v237 = vshll.u32 %v236, 23
        %v238 = vor.u32 4788187, %v237
        %v239 = vand.u32 2147483647, %v238
        %v241 = vcvt.s32.f32 %v234
        %v242 = vmul.f32 %v241, %v239
        %v243 = vxor.u32 %v242, 2147483648
        %v244 = vsel %vm161, %v243, %v242
        %v245 = vsub.s32 4, %v221
        %v246 = vsel %vm161, %v245, %v221
        %v247 = vsel %vm160, %v158, %v244
        %v248 = vsel %vm160, 0, %v246
        %v249 = vcosq.f32.pop %v247
        %v250 = vsinq.f32.pop %v247
        %vm251 = vweird.f32 %v158
        %v252 = vadd.s32 %v248, 3
        %v253 = vand.u32 %v252, 3
        %vm254 = vcmp.lt.s32.totalorder %v253, 2
        %vm255 = vcmp.eq.s32.totalorder %v253, 0
        %v256 = vxor.u32 %v250, 2147483648
        %v257 = vsel %vm255, %v249, %v256
        %vm258 = vcmp.eq.s32.totalorder %v253, 2
        %v259 = vxor.u32 %v249, 2147483648
        %v260 = vsel %vm258, %v259, %v250
        %v261 = vsel %vm254, %v257, %v260
        %v262 = vsel %vm251, nan, %v261
        %s263 = scalar_lea.vmem %s152, 8 [#allocation3]
        %264 = vst [vmem:[%s263] sm:$0xff] %v262
        %s265 = scalar_lea.vmem %s137, 16 [#allocation2]
        %v266 = vld [vmem:[%s265] sm:$0xff]
        %v267 = vand.u32 2147483647, %v266
        %vm268 = vcmp.le.f32.partialorder %v267, 0.7853982
        %vm269 = vcmp.lt.s32.totalorder %v266, 0
        %v270 = vand.u32 %v266, 2139095040
        %v271 = vshrl.u32 %v270, 23
        %v272 = vsub.s32 %v271, 127
        %v273 = vand.u32 2147483647, %v266
        %v274 = vand.u32 %v273, 8388607
        %v275 = vor.u32 %v274, 8388608
        %v276 = vsub.s32 0, %v275
        %v277 = vadd.s32 %v272, 1
        %vm278 = vcmp.gt.s32.totalorder %v277, 0
        %v279 = vsel %vm278, %v277, 0
        %v280 = vshrl.u32 %v279, 5
        %v281 = vand.u32 %v279, 31
        %v282 = vsub.s32 32, %v281
        %v283 = vshrl.u32 683565275, %v282
        %v284 = vshll.u32 683565275, %v281
        %v285 = vshrl.u32 2475754826, %v282
        %v286 = vor.u32 %v284, %v285
        %v287 = vshll.u32 2475754826, %v281
        %v288 = vshrl.u32 2131351028, %v282
        %v289 = vor.u32 %v287, %v288
        %v290 = vshll.u32 2131351028, %v281
        %v291 = vshrl.u32 2102212464, %v282
        %v292 = vor.u32 %v290, %v291
        %v293 = vshll.u32 2102212464, %v281
        %v294 = vshrl.u32 920167782, %v282
        %v295 = vor.u32 %v293, %v294
        %v296 = vshll.u32 920167782, %v281
        %v297 = vshrl.u32 1326507024, %v282
        %v298 = vor.u32 %v296, %v297
        %vm299 = vcmp.lt.s32.totalorder %v280, 1
        %vm300 = vcmp.lt.s32.totalorder %v280, 2
        %vm301 = vcmp.lt.s32.totalorder %v280, 3
        %vm302 = vcmp.lt.s32.totalorder %v280, 4
        %v303 = vsel %vm299, %v283, %v286
        %v304 = vsel %vm302, %v292, 2102212464
        %v305 = vsel %vm301, %v289, %v304
        %v306 = vsel %vm300, %v303, %v305
        %v307 = vsel %vm299, %v286, %v289
        %v308 = vsel %vm302, %v295, 920167782
        %v309 = vsel %vm301, %v292, %v308
        %v310 = vsel %vm300, %v307, %v309
        %v311 = vsel %vm299, %v289, %v292
        %v312 = vsel %vm302, %v298, 1326507024
        %v313 = vsel %vm301, %v295, %v312
        %v314 = vsel %vm300, %v311, %v313
        %v315 = vshll.u32 %v275, 8
        %v316 = vmul.u32.u64.compose %v315, %v314
        %v317 = vextract.low.u32 %v316
        %v318 = vextract.high.u32 %v316
        %v319 = vmul.u32.u64.compose %v315, %v310
        %v320 = vextract.low.u32 %v319
        %v321 = vextract.high.u32 %v319
        %v322 = vmul.u32 %v315, %v306
        %v323 = vadd.s32 %v318, %v320
        %vm324 = vc.u32 %v318, %v320
        %v325 = vadd.s32 %v321, 1
        %v326 = vsel %vm324, %v325, %v321
        %v327 = vadd.s32 %v322, %v326
        %v328 = vadd.s32 %v327, 536870912
        %v329 = vshrl.u32 %v328, 30
        %v330 = vshll.u32 %v329, 30
        %v331 = vsub.s32 %v327, %v330
        %vm332 = vcmp.lt.s32.totalorder %v331, 0
        %v333 = vsub.s32 0, %v331
        %v334 = vsel %vm332, %v333, %v331
        %v335 = vclz %v334
        %v336 = vsub.s32 %v335, 2
        %vm337 = vcmp.gt.s32.totalorder 0, %v336
        %v338 = vsel %vm337, 0, %v336
        %v339 = vsub.s32 32, %v338
        %v340 = vshll.u32 %v331, %v338
        %v341 = vshrl.u32 %v323, %v339
        %v342 = vor.u32 %v340, %v341
        %v343 = vsub.s32 4294967266, %v338
        %v344 = vadd.s32 %v343, 127
        %v345 = vshll.u32 %v344, 23
        %v346 = vor.u32 4788187, %v345
        %v347 = vand.u32 2147483647, %v346
        %v349 = vcvt.s32.f32 %v342
        %v350 = vmul.f32 %v349, %v347
        %v351 = vxor.u32 %v350, 2147483648
        %v352 = vsel %vm269, %v351, %v350
        %v353 = vsub.s32 4, %v329
        %v354 = vsel %vm269, %v353, %v329
        %v355 = vsel %vm268, %v266, %v352
        %v356 = vsel %vm268, 0, %v354
        %v357 = vcosq.f32.pop %v355
        %v358 = vsinq.f32.pop %v355
        %vm359 = vweird.f32 %v266
        %v360 = vand.u32 %v356, 3
        %vm361 = vcmp.lt.s32.totalorder %v360, 2
        %vm362 = vcmp.eq.s32.totalorder %v360, 0
        %v363 = vxor.u32 %v358, 2147483648
        %v364 = vsel %vm362, %v357, %v363
        %vm365 = vcmp.eq.s32.totalorder %v360, 2
        %v366 = vxor.u32 %v357, 2147483648
        %v367 = vsel %vm365, %v366, %v358
        %v368 = vsel %vm361, %v364, %v367
        %v369 = vsel %vm359, nan, %v368
        %s370 = scalar_lea.vmem %s152, 16 [#allocation3]
        %371 = vst [vmem:[%s370] sm:$0xff] %v369
        %s372 = sand.u32 %s46, 1
        %s373 = sand.u32 %s46, 1
        %s374 = smul.addr %s373, 24
        %s375 = scalar_lea.vmem [#allocation3], %s374
        // Predicated region
        $region63: #{_apply_transforms_pallas.1} parent=57 // pred_check
          %p376 = pneg %p56
        $region64: #{_apply_transforms_pallas.1} parent=57 // pred_check_branch
          %378 = sbr.rel (%p376) target = $region66
        $region65: #{_apply_transforms_pallas.1} parent=57 // pred_region
          %s379 = smul.addr %s12, 8
          %s380 = scalar_lea.vmem %s1, %s379
          // Predicated region
          $region67: #{_apply_transforms_pallas.1} parent=65 // pred_check
            _
          $region68: #{_apply_transforms_pallas.1} parent=65 // pred_check_branch
            %382 = sbr.rel (0) target = $region70
          $region69: #{_apply_transforms_pallas.1} parent=65 // pred_region
            // Predicated region
            $region71: #{_apply_transforms_pallas.1} parent=69 // pred_check
              _
            $region72: #{_apply_transforms_pallas.1} parent=69 // pred_check_branch
              %384 = sbr.rel (0) target = $region74
            $region73: #{_apply_transforms_pallas.1} parent=69 // pred_region
              // Predicated region
              $region86: #{_apply_transforms_pallas.1} parent=73 // pred_check
                _
              $region87: #{_apply_transforms_pallas.1} parent=73 // pred_check_branch
                %403 = sbr.rel (0) target = $region89
              $region88: #{_apply_transforms_pallas.1} parent=73 // pred_region
                loop: start=0, step=1, limit=1
                $region90: #{_apply_transforms_pallas.1} parent=88 // loop_pre_header
                  _
                $region91: #{_apply_transforms_pallas.1} parent=88 // loop_header
                  %s405 = sphi 0, %s409
                  %p406 = scmp.ge.s32.totalorder %s405, 1
                  %s410 = sphi %s375, %s375
                  %s411 = sphi %s380, %s380
                $region92: #{_apply_transforms_pallas.1} parent=88 // loop_header_branch
                  %408 = sbr.rel (%p406) target = $region96
                $region93: #{_apply_transforms_pallas.1} parent=88 // loop_body
                  %v412 = vld [vmem:[%s410] sm:$0xff]
                  %413 = vst [vmem:[%s411] sm:$0xff] %v412
                  %v414 = vld [vmem:[%s410 + $0x8] sm:$0xff]
                  %415 = vst [vmem:[%s411 + $0x18] sm:$0xff] %v414
                  %v416 = vld [vmem:[%s410 + $0x10] sm:$0xff]
                  %417 = vst [vmem:[%s411 + $0x30] sm:$0xff] %v416
                $region94: #{_apply_transforms_pallas.1} parent=88 // loop_footer
                  %s409 = sadd.s32 1, %s405
                $region95: #{_apply_transforms_pallas.1} parent=88 // loop_footer_branch
                  %404 = sbr.rel target = $region91
                $region96: #{_apply_transforms_pallas.1} parent=88 // loop_exit
                  _
              $region89: #{_apply_transforms_pallas.1} parent=73 // pred_fallthru
                _
              // Predicated region
              $region97: #{_apply_transforms_pallas.1} parent=73 // pred_check
                _
              $region98: #{_apply_transforms_pallas.1} parent=73 // pred_check_branch
                %419 = sbr.rel target = $region100
              $region99: #{_apply_transforms_pallas.1} parent=73 // pred_region
                _
              $region100: #{_apply_transforms_pallas.1} parent=73 // pred_fallthru
                _
            $region74: #{_apply_transforms_pallas.1} parent=69 // pred_fallthru
              _
            // Predicated region
            $region75: #{_apply_transforms_pallas.1} parent=69 // pred_check
              _
            $region76: #{_apply_transforms_pallas.1} parent=69 // pred_check_branch
              %386 = sbr.rel target = $region78
            $region77: #{_apply_transforms_pallas.1} parent=69 // pred_region
              loop: start=0, step=1, limit=1
              $region79: #{_apply_transforms_pallas.1} parent=77 // loop_pre_header
                _
              $region80: #{_apply_transforms_pallas.1} parent=77 // loop_header
                %s389 = sphi 0, %s393
                %p390 = scmp.ge.s32.totalorder %s389, 1
                %s394 = sphi %s375, %s375
                %s395 = sphi %s380, %s380
              $region81: #{_apply_transforms_pallas.1} parent=77 // loop_header_branch
                %392 = sbr.rel (%p390) target = $region85
              $region82: #{_apply_transforms_pallas.1} parent=77 // loop_body
                %v396 = vld [vmem:[%s394] sm:$0xff]
                %397 = vst [vmem:[%s395] sm:$0xff] %v396
                %v398 = vld [vmem:[%s394 + $0x8] sm:$0xff]
                %399 = vst [vmem:[%s395 + $0x18] sm:$0xff] %v398
                %v400 = vld [vmem:[%s394 + $0x10] sm:$0xff]
                %401 = vst [vmem:[%s395 + $0x30] sm:$0xff] %v400
              $region83: #{_apply_transforms_pallas.1} parent=77 // loop_footer
                %s393 = sadd.s32 1, %s389
              $region84: #{_apply_transforms_pallas.1} parent=77 // loop_footer_branch
                %388 = sbr.rel target = $region80
              $region85: #{_apply_transforms_pallas.1} parent=77 // loop_exit
                _
            $region78: #{_apply_transforms_pallas.1} parent=69 // pred_fallthru
              _
          $region70: #{_apply_transforms_pallas.1} parent=65 // pred_fallthru
            _
          %420 = vnop
        $region66: #{_apply_transforms_pallas.1} parent=57 // pred_fallthru
          _
      $region58: #{_apply_transforms_pallas.1} parent=5 // pred_fallthru
        _
      %p421 = scmp.le.s32.totalorder 2, %s7
      // Predicated region
      $region101: #{_apply_transforms_pallas.1} parent=5 // pred_check
        %p422 = pneg %p421
      $region102: #{_apply_transforms_pallas.1} parent=5 // pred_check_branch
        %424 = sbr.rel (%p422) target = $region104
      $region103: #{_apply_transforms_pallas.1} parent=5 // pred_region
        %s425 = ssub.s32 %s7, 2
        // Predicated region
        $region105: #{_apply_transforms_pallas.1} parent=103 // pred_check
          %p426 = pneg %p62
        $region106: #{_apply_transforms_pallas.1} parent=103 // pred_check_branch
          %428 = sbr.rel (%p426) target = $region108
        $region107: #{_apply_transforms_pallas.1} parent=103 // pred_region
          %s429 = sand.u32 %s47, 1
          %s430 = sand.u32 %s47, 1
          %s431 = smul.addr %s430, 24
          %s432 = scalar_lea.vmem [#allocation3], %s431
        $region108: #{_apply_transforms_pallas.1} parent=103 // pred_fallthru
          _
      $region104: #{_apply_transforms_pallas.1} parent=5 // pred_fallthru
        _
    $region6: #{_apply_transforms_pallas.1} parent=1 // loop_footer
      %s11 = sadd.s32 1, %s7
    $region7: #{_apply_transforms_pallas.1} parent=1 // loop_footer_branch
      %6 = sbr.rel target = $region3
    $region8: #{_apply_transforms_pallas.1} parent=1 // loop_exit
      _

</llo_original>
